<compile_context>
chip_gen: v7x
topology: tpu7x:2x2x1
jax: 0.10.0
libtpu: 0.0.40
codegen_flags: <defaults>
</compile_context>

<pallas_src>
import jax
import jax.numpy as jnp
from jax.experimental import pallas as pl
from jax.experimental.pallas import tpu as pltpu


def _masked_sse_kernel(obs_ref, tgt_ref, mask_ref, out_ref):
    """(tile_rows, H) tile -> (8, H) lane-dense partial sums (VPU-only hot loop)."""
    o = obs_ref[...].astype(jnp.float32)          # cast before subtract (accuracy)
    t = tgt_ref[...].astype(jnp.float32)
    d = o - t
    masked = d * d * mask_ref[...]                # (tile_rows, H); mask broadcast over lanes
    tr, h = masked.shape
    # Collapse groups of 8 rows (one f32 vreg row-block each) with pure VPU adds;
    # no cross-lane (XLU) reduction in the steady state.
    out_ref[...] = jnp.sum(masked.reshape(tr // 8, 8, h), axis=0)


def _choose_tile_rows(n_rows, hidden, itemsize, target_f32_bytes=4 << 20):
    """Pick the largest row tile whose f32 working set is ~target_f32_bytes."""
    align = max(8, 32 // max(int(itemsize), 1))   # 8 (f32), 16 (bf16), 32 (8-bit)
    rows = target_f32_bytes // max(hidden * 4, 1)
    rows = max(align, (rows // align) * align)
    n_aligned = pl.cdiv(n_rows, align) * align
    return min(rows, n_aligned)


def masked_total_sse(obs_flat, tgt_flat, mask_flat):
    """obs_flat/tgt_flat: (N, H); mask_flat: (N, 1) float32.
    Returns scalar f32:  sum_n mask[n] * sum_d (obs[n,d] - tgt[n,d])^2
    """
    n_rows, hidden = obs_flat.shape
    tile_rows = _choose_tile_rows(n_rows, hidden, obs_flat.dtype.itemsize)

    # Pad rows to a multiple of tile_rows; padded rows carry mask == 0, so they
    # contribute nothing to the total.
    num_blocks = pl.cdiv(n_rows, tile_rows)
    n_pad = num_blocks * tile_rows
    if n_pad != n_rows:
        pad = n_pad - n_rows
        obs_flat = jnp.pad(obs_flat, ((0, pad), (0, 0)))
        tgt_flat = jnp.pad(tgt_flat, ((0, pad), (0, 0)))
        mask_flat = jnp.pad(mask_flat, ((0, pad), (0, 0)))

    partials = pl.pallas_call(
        _masked_sse_kernel,
        out_shape=jax.ShapeDtypeStruct((num_blocks * 8, hidden), jnp.float32),
        grid_spec=pltpu.PrefetchScalarGridSpec(
            num_scalar_prefetch=0,
            grid=(num_blocks,),
            in_specs=[
                pl.BlockSpec((tile_rows, hidden), lambda i: (i, 0)),
                pl.BlockSpec((tile_rows, hidden), lambda i: (i, 0)),
                pl.BlockSpec((tile_rows, 1), lambda i: (i, 0)),
            ],
            out_specs=pl.BlockSpec((8, hidden), lambda i: (i, 0)),
        ),
        compiler_params=pltpu.CompilerParams(
            dimension_semantics=("parallel",),   # each step owns a distinct output block
            vmem_limit_bytes=48 << 20,           # fits v7x's 64 MiB physical, raises v5e's 16 MiB default
        ),
    )(obs_flat, tgt_flat, mask_flat)

    # Tiny final reduce over the lane-dense per-block partials.
    return jnp.sum(partials)


def representation_mse_loss_with_length_normalization(obs_reps, target_reps, mask):
    """
    obs_reps, target_reps: (bs, num_toks, hidden) float
    mask:                  (bs, num_toks) bool / {0,1}
    """
    bs, num_toks, hidden = obs_reps.shape
    obs_flat = obs_reps.reshape(bs * num_toks, hidden)
    tgt_flat = target_reps.reshape(bs * num_toks, hidden)
    mask_f = mask.astype(jnp.float32).reshape(bs * num_toks, 1)

    total = masked_total_sse(obs_flat, tgt_flat, mask_f)        # scalar, in-kernel

    # Glue (matches the PyTorch reference exactly): scalar total divided by each
    # sequence's length, then averaged over the batch.
    lengths = mask.astype(jnp.float32).sum(axis=-1)             # (bs,)
    # TODO(synk): reference has no guard for all-masked sequences (lengths == 0).
    loss = (total / lengths).mean()
    return loss.astype(obs_reps.dtype)


def _reference(obs_reps, target_reps, mask):
    sq = (obs_reps - target_reps) ** 2
    per_tok = sq.sum(-1) * mask.astype(obs_reps.dtype)
    total = per_tok.sum()
    lengths = mask.astype(obs_reps.dtype).sum(-1)
    return (total / lengths).mean()


if __name__ == "__main__":
    key = jax.random.PRNGKey(0)
    bs, num_toks, hidden = 2, 8, 32
    k1, k2, k3 = jax.random.split(key, 3)
    obs_reps = jax.random.normal(k1, (bs, num_toks, hidden), dtype=jnp.float32)
    target_reps = jax.random.normal(k2, (bs, num_toks, hidden), dtype=jnp.float32)
    # binary mask with at least one valid token per sequence
    mask = (jax.random.uniform(k3, (bs, num_toks)) > 0.3)
    mask = mask.at[:, 0].set(True)

    loss = representation_mse_loss_with_length_normalization(obs_reps, target_reps, mask)
    loss = jax.block_until_ready(loss)

    ref = _reference(obs_reps, target_reps, mask)
    assert jnp.allclose(loss, ref, rtol=1e-5, atol=1e-5), (loss, ref)
    print("KERNEL_OK")
</pallas_src>

<mosaic_0001>
module attributes {stable_mosaic.version = 11 : i64} {
  func.func @_masked_sse_kernel(%arg0: i32, %arg1: memref<16x32xf32, #tpu.memory_space<vmem>>, %arg2: memref<16x32xf32, #tpu.memory_space<vmem>>, %arg3: memref<16x1xf32, #tpu.memory_space<vmem>>, %arg4: memref<8x32xf32, #tpu.memory_space<vmem>>) attributes {dimension_semantics = [#tpu.dimension_semantics<parallel>], iteration_bounds = array<i64: 1>, scalar_prefetch = 0 : i64, scratch_operands = 0 : i64, tpu.core_type = #tpu.core_type<tc>, window_params = [{transform_indices = @transform_0, window_bounds = array<i64: 16, 32>}, {transform_indices = @transform_1, window_bounds = array<i64: 16, 32>}, {transform_indices = @transform_2, window_bounds = array<i64: 16, 1>}, {transform_indices = @transform_3, window_bounds = array<i64: 8, 32>}]} {
    %c0 = arith.constant 0 : index
    %c0_0 = arith.constant 0 : index
    %0 = vector.load %arg1[%c0, %c0_0] : memref<16x32xf32, #tpu.memory_space<vmem>>, vector<16x32xf32>
    %c0_1 = arith.constant 0 : index
    %c0_2 = arith.constant 0 : index
    %1 = vector.load %arg2[%c0_1, %c0_2] : memref<16x32xf32, #tpu.memory_space<vmem>>, vector<16x32xf32>
    %2 = arith.subf %0, %1 : vector<16x32xf32>
    %3 = arith.mulf %2, %2 : vector<16x32xf32>
    %c0_3 = arith.constant 0 : index
    %c0_4 = arith.constant 0 : index
    %4 = vector.load %arg3[%c0_3, %c0_4] : memref<16x1xf32, #tpu.memory_space<vmem>>, vector<16x1xf32>
    %5 = vector.broadcast %4 : vector<16x1xf32> to vector<16x32xf32>
    %6 = arith.mulf %3, %5 : vector<16x32xf32>
    %7 = vector.shape_cast %6 : vector<16x32xf32> to vector<2x8x32xf32>
    %cst = arith.constant dense<0.000000e+00> : vector<8x32xf32>
    %8 = vector.multi_reduction <add>, %7, %cst [0] : vector<2x8x32xf32> to vector<8x32xf32>
    %c0_5 = arith.constant 0 : index
    %c0_6 = arith.constant 0 : index
    %9 = vector.load %arg4[%c0_5, %c0_6] : memref<8x32xf32, #tpu.memory_space<vmem>>, vector<8x32xf32>
    tpu.vector_store %arg4[%c0_5, %c0_6], %8 {strides = array<i32>} : memref<8x32xf32, #tpu.memory_space<vmem>>, vector<8x32xf32>,
    return
  }
  func.func @transform_0(%arg0: i32) -> (i32, i32) {
    %c0_i32 = arith.constant 0 : i32
    %c0_i32_0 = arith.constant 0 : i32
    return %arg0, %c0_i32 : i32, i32
  }
  func.func @transform_1(%arg0: i32) -> (i32, i32) {
    %c0_i32 = arith.constant 0 : i32
    %c0_i32_0 = arith.constant 0 : i32
    return %arg0, %c0_i32 : i32, i32
  }
  func.func @transform_2(%arg0: i32) -> (i32, i32) {
    %c0_i32 = arith.constant 0 : i32
    %c0_i32_0 = arith.constant 0 : i32
    return %arg0, %c0_i32 : i32, i32
  }
  func.func @transform_3(%arg0: i32) -> (i32, i32) {
    %c0_i32 = arith.constant 0 : i32
    %c0_i32_0 = arith.constant 0 : i32
    return %arg0, %c0_i32 : i32, i32
  }
}

</mosaic_0001>

<llo_original>
// kernel: tpu_custom_call.1
$region0: #{tpu_custom_call.1}
  #allocation0 [shape = 'u32[]', space=smem, size = 0x4, offset = 0x4, fixed_abs, tag = 'smem constant byte address 0x4 - core index']
  #allocation1 [shape = 'u32[144,128]{1,0:T(1,128)}', space=vmem, size = 0x12000, scoped, tag = 'internal scratch']
  %s0 = inlined_call_operand.vmem [shape: f32[16,32], index: 0, kind: input, shape index: {}]
  %s1 = inlined_call_operand.hbm [shape: f32[16,32], index: 1, kind: input, shape index: {}]
  %s2 = inlined_call_operand.vmem [shape: f32[16,1], index: 2, kind: input, shape index: {}]
  %s3 = inlined_call_operand.hbm [shape: f32[8,32], index: 3, kind: output, shape index: {}]
  %s4 = sld [smem:[#allocation0]]
  $region26: #{tpu_custom_call.1} parent=0
    _
  %s6 = ssub.s32 1, %s4
  %s7 = scalar_select 0, %s6, %s4
  $region1: #{tpu_custom_call.1} parent=0
    #allocation2 [shape = 'u8[8192]{0}', space=vmem, size = 0x2000, scoped, tag = 'input window, operand 1, single buffered']
    #allocation3 [shape = 's32[1]{0}', space=sflag, size = 0x4, scoped, tag = 'scoped memory for tpu_custom_call.1']
    #allocation4 [shape = 's32[1]{0}', space=sflag, size = 0x4, scoped, tag = 'scoped memory for tpu_custom_call.1']
    #allocation5 [shape = 'u8[4096]{0}', space=vmem, size = 0x1000, scoped, tag = 'output window, operand 0, single buffered']
    %8 = vsyncpa [#allocation3], 0
    %9 = vsyncpa [#allocation4], 0
    // Predicated region
    $region2: #{tpu_custom_call.1} parent=1 // pred_check
      _
    $region3: #{tpu_custom_call.1} parent=1 // pred_check_branch
      %11 = sbr.rel (0) target = $region5
    $region4: #{tpu_custom_call.1} parent=1 // pred_region
      _
    $region5: #{tpu_custom_call.1} parent=1 // pred_fallthru
      _
    // Predicated region
    $region6: #{tpu_custom_call.1} parent=1 // pred_check
      _
    $region7: #{tpu_custom_call.1} parent=1 // pred_check_branch
      %13 = sbr.rel (0) target = $region9
    $region8: #{tpu_custom_call.1} parent=1 // pred_region
      %s15 = ssub.s32 256, 256
      %16 = vsyncadd [#allocation3], %s15
      %s17 = sshll.u32 [#allocation2], 4
      %s18 = int_to_ptr.vmem [resolvable:$true] %s17
      %23 = dma.hbm_to_vmem [thread:$0]  %s1, 256, %s18, [#allocation3], 128, 128, 8
    $region9: #{tpu_custom_call.1} parent=1 // pred_fallthru
      _
    // Predicated region
    $region10: #{tpu_custom_call.1} parent=1 // pred_check
      _
    $region11: #{tpu_custom_call.1} parent=1 // pred_check_branch
      %25 = sbr.rel (0) target = $region13
    $region12: #{tpu_custom_call.1} parent=1 // pred_region
      _
    $region13: #{tpu_custom_call.1} parent=1 // pred_fallthru
      _
    // Predicated region
    $region14: #{tpu_custom_call.1} parent=1 // pred_check
      _
    $region15: #{tpu_custom_call.1} parent=1 // pred_check_branch
      %27 = sbr.rel (0) target = $region17
    $region16: #{tpu_custom_call.1} parent=1 // pred_region
      %28 = dma.done [#allocation3], 256
    $region17: #{tpu_custom_call.1} parent=1 // pred_fallthru
      _
    %v29 = vld [vmem:[%s0] sm:$0xff]
    %v30 = vld [vmem:[%s0 + $0x8] sm:$0xff]
    %v31 = vld [vmem:[#allocation2] sm:$0xff]
    %v32 = vld [vmem:[#allocation2 + $0x8] sm:$0xff]
    %v33 = vsub.f32 %v29, %v31
    %v34 = vsub.f32 %v30, %v32
    %v35 = vmul.f32 %v33, %v33
    %v36 = vmul.f32 %v34, %v34
    %v37 = vld [vmem:[%s2] sm:$0xff]
    %v38 = vld [vmem:[%s2 + $0x8] sm:$0xff]
    %40 = vset.pattern.permute.xlu0 0
    %41 = vperm.xlu0 %40, %v37
    %v42 = vpop.permute.xlu0 %41
    %45 = vset.pattern.permute.xlu0 0
    %46 = vperm.xlu0 %45, %v38
    %v47 = vpop.permute.xlu0 %46
    %v49 = vmul.f32 %v35, %v42
    %v50 = vmul.f32 %v36, %v47
    %vm51 = vcmask 261120
    %v52 = vsel %vm51, %v49, 0.0
    %v53 = vsel %vm51, %v50, 0.0
    %v54 = vadd.f32 %v52, %v53
    %55 = vst.msk [vmem:[#allocation5] sm:$0xff] %vm51, %v54
    // Predicated region
    $region18: #{tpu_custom_call.1} parent=1 // pred_check
      _
    $region19: #{tpu_custom_call.1} parent=1 // pred_check_branch
      %57 = sbr.rel (0) target = $region21
    $region20: #{tpu_custom_call.1} parent=1 // pred_region
      %s59 = ssub.s32 128, 128
      %60 = vsyncadd [#allocation4], %s59
      %s62 = sshll.u32 [#allocation5], 4
      %s63 = int_to_ptr.vmem [resolvable:$true] %s62
      %65 = dma.vmem_to_hbm [thread:$0]  %s63, 128, %s3, [#allocation4]
    $region21: #{tpu_custom_call.1} parent=1 // pred_fallthru
      _
    // Predicated region
    $region22: #{tpu_custom_call.1} parent=1 // pred_check
      _
    $region23: #{tpu_custom_call.1} parent=1 // pred_check_branch
      %67 = sbr.rel (0) target = $region25
    $region24: #{tpu_custom_call.1} parent=1 // pred_region
      %68 = dma.done [#allocation4], 128
    $region25: #{tpu_custom_call.1} parent=1 // pred_fallthru
      _
    %69 = vsyncpa [#allocation3], 1
    %70 = vsyncpa [#allocation4], 1

</llo_original>
